<compile_context>
chip_gen: v7x
topology: tpu7x:2x2x1
jax: 0.10.0
libtpu: 0.0.40
codegen_flags: <defaults>
</compile_context>

<pallas_src>
import jax
import jax.numpy as jnp
from jax.experimental import pallas as pl
from jax.experimental.pallas import tpu as pltpu


def actor_kernel(x_ref, w1_ref, b1_ref, w3_ref, b3_ref, out_ref):
    # x_ref: (in_dim, TB)  -- batch on the lane axis (lane-dense)
    # h = relu(W1 @ x + b1): (hidden, TB)
    h = jnp.dot(w1_ref[...], x_ref[...], preferred_element_type=jnp.float32)
    h = jnp.maximum(h + b1_ref[...], 0.0)                     # (H,TB) + (H,1)

    # logits = W3 @ h + b3: (out_dim, TB)
    logits = jnp.dot(w3_ref[...], h, preferred_element_type=jnp.float32)
    logits = logits + b3_ref[...]                             # (O,TB) + (O,1)

    # softmax over the action axis (axis 0 == sublane axis, only out_dim rows).
    # Exact divide -> rows sum to 1 to float rounding.
    m = jnp.max(logits, axis=0, keepdims=True)
    e = jnp.exp(logits - m)
    out_ref[...] = (e / jnp.sum(e, axis=0, keepdims=True)).astype(out_ref.dtype)


def _round_up(n, m):
    return ((n + m - 1) // m) * m


def _num_tensorcores():
    """Best-effort: v7x has 2 TensorCores per chip; v5e/v6e have 1."""
    try:
        kind = jax.devices()[0].device_kind.lower()
        return 2 if "v7" in kind else 1
    except Exception:
        return 1


def actor_forward(x, w1, b1, w3, b3, *, block_b=512, num_cores=None):
    """x: (B, in_dim) f32.
    Weights in PyTorch layout: w1 (hidden, in_dim), w3 (out_dim, hidden);
    biases stored as column vectors: b1 (hidden, 1), b3 (out_dim, 1)."""
    B, in_dim = x.shape
    hidden = w1.shape[0]
    out_dim = w3.shape[0]
    if num_cores is None:
        num_cores = _num_tensorcores()

    # Batch on the lane axis.
    x_t = x.T  # (in_dim, B)

    # Tile selection: rows-per-core, lane-aligned, capped at block_b.
    target = pl.cdiv(B, num_cores)
    tb = min(block_b, _round_up(target, 128))
    if tb >= B:
        # Single tile: use a full-extent batch block -> no 128-multiple
        # constraint, no padding, grid=(1,).
        tb = B
        b_pad = B
    else:
        b_pad = _round_up(B, tb)
        if b_pad != B:
            x_t = jnp.pad(x_t, ((0, 0), (0, b_pad - B)))  # zero cols, sliced off

    grid = (b_pad // tb,)
    out_t = pl.pallas_call(
        actor_kernel,
        out_shape=jax.ShapeDtypeStruct((out_dim, b_pad), jnp.float32),
        grid=grid,
        in_specs=[
            # x tiled over the batch (lane) axis
            pl.BlockSpec((in_dim, tb), lambda i: (0, i)),
            # weights & biases: same block every step -> DMA'd once, VMEM-resident
            pl.BlockSpec((hidden, in_dim), lambda i: (0, 0)),
            pl.BlockSpec((hidden, 1), lambda i: (0, 0)),
            pl.BlockSpec((out_dim, hidden), lambda i: (0, 0)),
            pl.BlockSpec((out_dim, 1), lambda i: (0, 0)),
        ],
        out_specs=pl.BlockSpec((out_dim, tb), lambda i: (0, i)),
        compiler_params=pltpu.CompilerParams(
            dimension_semantics=("parallel",)),  # shard batch tiles across TCs (v7x)
    )(x_t, w1, b1, w3, b3)

    return out_t[:, :B].T  # (B, out_dim)


def init_linear(key, fan_in, fan_out):
    """PyTorch nn.Linear default init: U(-1/sqrt(fan_in), 1/sqrt(fan_in)).
    Weight kept in PyTorch layout (fan_out, fan_in); bias as (fan_out, 1)."""
    kw, kb = jax.random.split(key)
    bound = 1.0 / jnp.sqrt(fan_in)
    w = jax.random.uniform(kw, (fan_out, fan_in), jnp.float32, -bound, bound)
    b = jax.random.uniform(kb, (fan_out, 1), jnp.float32, -bound, bound)
    return w, b


def reference_forward(x, w1, b1, w3, b3):
    h = jnp.maximum(x @ w1.T + b1[:, 0], 0.0)
    return jax.nn.softmax(h @ w3.T + b3[:, 0], axis=-1)


if __name__ == "__main__":
    in_dim, hidden_dim, out_dim = 8, 64, 4
    batch = 256  # amortize pallas_call fixed cost over many actor rows

    key = jax.random.PRNGKey(0)
    kx, k1, k2, k3 = jax.random.split(key, 4)

    x = jax.random.normal(kx, (batch, in_dim), jnp.float32)
    w1, b1 = init_linear(k1, in_dim, hidden_dim)
    _w2, _b2 = init_linear(k2, hidden_dim, hidden_dim)  # fc2: defined but unused in forward
    w3, b3 = init_linear(k3, hidden_dim, out_dim)

    ref = reference_forward(x, w1, b1, w3, b3)

    # Default path (single grid step on v5e/v6e; split across TCs on v7x).
    out = jax.block_until_ready(actor_forward(x, w1, b1, w3, b3))
    assert out.shape == (batch, out_dim)
    assert jnp.allclose(out, ref, atol=1e-4, rtol=1e-4)
    assert jnp.allclose(jnp.sum(out, axis=-1), 1.0, atol=1e-5)

    # Explicit multi-tile path (exercises padding-free 2-step grid, 128-row tiles).
    out_multi = jax.block_until_ready(
        actor_forward(x, w1, b1, w3, b3, block_b=128, num_cores=2))
    assert out_multi.shape == (batch, out_dim)
    assert jnp.allclose(out_multi, ref, atol=1e-4, rtol=1e-4)

    # Tiny / ragged batch path (full-extent batch block, no padding, grid=(1,)).
    x_small = x[:5]
    out_small = jax.block_until_ready(actor_forward(x_small, w1, b1, w3, b3))
    assert out_small.shape == (5, out_dim)
    assert jnp.allclose(out_small, ref[:5], atol=1e-4, rtol=1e-4)
    assert jnp.allclose(jnp.sum(out_small, axis=-1), 1.0, atol=1e-5)

    print("KERNEL_OK")
</pallas_src>

<mosaic_0001>
module attributes {stable_mosaic.version = 11 : i64} {
  func.func @actor_kernel(%arg0: i32, %arg1: memref<8x256xf32, #tpu.memory_space<vmem>>, %arg2: memref<64x8xf32, #tpu.memory_space<vmem>>, %arg3: memref<64x1xf32, #tpu.memory_space<vmem>>, %arg4: memref<4x64xf32, #tpu.memory_space<vmem>>, %arg5: memref<4x1xf32, #tpu.memory_space<vmem>>, %arg6: memref<4x256xf32, #tpu.memory_space<vmem>>) attributes {dimension_semantics = [#tpu.dimension_semantics<parallel>], iteration_bounds = array<i64: 1>, scalar_prefetch = 0 : i64, scratch_operands = 0 : i64, tpu.core_type = #tpu.core_type<tc>, window_params = [{transform_indices = @transform_0, window_bounds = array<i64: 8, 256>}, {pipeline_mode = #tpu.pipeline_mode<synchronous>, transform_indices = @transform_1, window_bounds = array<i64: 64, 8>}, {pipeline_mode = #tpu.pipeline_mode<synchronous>, transform_indices = @transform_2, window_bounds = array<i64: 64, 1>}, {pipeline_mode = #tpu.pipeline_mode<synchronous>, transform_indices = @transform_3, window_bounds = array<i64: 4, 64>}, {pipeline_mode = #tpu.pipeline_mode<synchronous>, transform_indices = @transform_4, window_bounds = array<i64: 4, 1>}, {transform_indices = @transform_5, window_bounds = array<i64: 4, 256>}]} {
    %c0 = arith.constant 0 : index
    %c0_0 = arith.constant 0 : index
    %0 = vector.load %arg2[%c0, %c0_0] : memref<64x8xf32, #tpu.memory_space<vmem>>, vector<64x8xf32>
    %c0_1 = arith.constant 0 : index
    %c0_2 = arith.constant 0 : index
    %1 = vector.load %arg1[%c0_1, %c0_2] : memref<8x256xf32, #tpu.memory_space<vmem>>, vector<8x256xf32>
    %cst = arith.constant dense<0.000000e+00> : vector<64x256xf32>
    %2 = tpu.matmul %0, %1, %cst {dimension_numbers = #tpu.dot_dimension_numbers<[1], [0], [0], [1], [0, 0, 1, 1], [], []>} : vector<64x8xf32>, vector<8x256xf32>, vector<64x256xf32> -> vector<64x256xf32>
    %c0_3 = arith.constant 0 : index
    %c0_4 = arith.constant 0 : index
    %3 = vector.load %arg3[%c0_3, %c0_4] : memref<64x1xf32, #tpu.memory_space<vmem>>, vector<64x1xf32>
    %4 = vector.broadcast %3 : vector<64x1xf32> to vector<64x256xf32>
    %5 = arith.addf %2, %4 : vector<64x256xf32>
    %cst_5 = arith.constant 0.000000e+00 : f32
    %6 = vector.broadcast %cst_5 : f32 to vector<64x256xf32>
    %7 = arith.maximumf %5, %6 : vector<64x256xf32>
    %c0_6 = arith.constant 0 : index
    %c0_7 = arith.constant 0 : index
    %8 = vector.load %arg4[%c0_6, %c0_7] : memref<4x64xf32, #tpu.memory_space<vmem>>, vector<4x64xf32>
    %cst_8 = arith.constant dense<0.000000e+00> : vector<4x256xf32>
    %9 = tpu.matmul %8, %7, %cst_8 {dimension_numbers = #tpu.dot_dimension_numbers<[1], [0], [0], [1], [0, 0, 1, 1], [], []>} : vector<4x64xf32>, vector<64x256xf32>, vector<4x256xf32> -> vector<4x256xf32>
    %c0_9 = arith.constant 0 : index
    %c0_10 = arith.constant 0 : index
    %10 = vector.load %arg5[%c0_9, %c0_10] : memref<4x1xf32, #tpu.memory_space<vmem>>, vector<4x1xf32>
    %11 = vector.broadcast %10 : vector<4x1xf32> to vector<4x256xf32>
    %12 = arith.addf %9, %11 : vector<4x256xf32>
    %cst_11 = arith.constant dense<0xFF800000> : vector<256xf32>
    %13 = vector.multi_reduction <maximumf>, %12, %cst_11 [0] : vector<4x256xf32> to vector<256xf32>
    %14 = vector.shape_cast %13 : vector<256xf32> to vector<1x256xf32>
    %15 = vector.broadcast %14 : vector<1x256xf32> to vector<4x256xf32>
    %16 = arith.subf %12, %15 : vector<4x256xf32>
    %17 = math.exp %16 : vector<4x256xf32>
    %cst_12 = arith.constant dense<0.000000e+00> : vector<256xf32>
    %18 = vector.multi_reduction <add>, %17, %cst_12 [0] : vector<4x256xf32> to vector<256xf32>
    %19 = vector.shape_cast %18 : vector<256xf32> to vector<1x256xf32>
    %20 = vector.broadcast %19 : vector<1x256xf32> to vector<4x256xf32>
    %21 = arith.divf %17, %20 : vector<4x256xf32>
    %c0_13 = arith.constant 0 : index
    %c0_14 = arith.constant 0 : index
    %22 = vector.load %arg6[%c0_13, %c0_14] : memref<4x256xf32, #tpu.memory_space<vmem>>, vector<4x256xf32>
    tpu.vector_store %arg6[%c0_13, %c0_14], %21 {strides = array<i32>} : memref<4x256xf32, #tpu.memory_space<vmem>>, vector<4x256xf32>,
    return
  }
  func.func @transform_0(%arg0: i32) -> (i32, i32) {
    %c0_i32 = arith.constant 0 : i32
    %c0_i32_0 = arith.constant 0 : i32
    return %c0_i32, %arg0 : i32, i32
  }
  func.func @transform_1(%arg0: i32) -> (i32, i32) {
    %c0_i32 = arith.constant 0 : i32
    %c0_i32_0 = arith.constant 0 : i32
    %c0_i32_1 = arith.constant 0 : i32
    return %c0_i32, %c0_i32_0 : i32, i32
  }
  func.func @transform_2(%arg0: i32) -> (i32, i32) {
    %c0_i32 = arith.constant 0 : i32
    %c0_i32_0 = arith.constant 0 : i32
    %c0_i32_1 = arith.constant 0 : i32
    return %c0_i32, %c0_i32_0 : i32, i32
  }
  func.func @transform_3(%arg0: i32) -> (i32, i32) {
    %c0_i32 = arith.constant 0 : i32
    %c0_i32_0 = arith.constant 0 : i32
    %c0_i32_1 = arith.constant 0 : i32
    return %c0_i32, %c0_i32_0 : i32, i32
  }
  func.func @transform_4(%arg0: i32) -> (i32, i32) {
    %c0_i32 = arith.constant 0 : i32
    %c0_i32_0 = arith.constant 0 : i32
    %c0_i32_1 = arith.constant 0 : i32
    return %c0_i32, %c0_i32_0 : i32, i32
  }
  func.func @transform_5(%arg0: i32) -> (i32, i32) {
    %c0_i32 = arith.constant 0 : i32
    %c0_i32_0 = arith.constant 0 : i32
    return %c0_i32, %arg0 : i32, i32
  }
}

</mosaic_0001>

<llo_original>
// kernel: tpu_custom_call.1
$region0: #{tpu_custom_call.1}
  #allocation0 [shape = 'u32[]', space=smem, size = 0x4, offset = 0x4, fixed_abs, tag = 'smem constant byte address 0x4 - core index']
  #allocation1 [shape = 'u32[144,128]{1,0:T(1,128)}', space=vmem, size = 0x12000, scoped, tag = 'internal scratch']
  %s0 = inlined_call_operand.vmem [shape: f32[8,256], index: 0, kind: input, shape index: {}]
  %s1 = inlined_call_operand.vmem [shape: f32[64,8], index: 1, kind: input, shape index: {}]
  %s2 = inlined_call_operand.vmem [shape: f32[64,1], index: 2, kind: input, shape index: {}]
  %s3 = inlined_call_operand.vmem [shape: f32[4,64], index: 3, kind: input, shape index: {}]
  %s4 = inlined_call_operand.vmem [shape: f32[4,1], index: 4, kind: input, shape index: {}]
  %s5 = inlined_call_operand.hbm [shape: f32[4,256], index: 5, kind: output, shape index: {}]
  %s6 = sld [smem:[#allocation0]]
  $region30: #{tpu_custom_call.1} parent=0
    _
  %s8 = ssub.s32 1, %s6
  %s9 = scalar_select 0, %s8, %s6
  $region1: #{tpu_custom_call.1} parent=0
    #allocation2 [shape = 'u8[4096]{0}', space=vmem, size = 0x1000, scoped, tag = 'output window, operand 0, single buffered']
    #allocation3 [shape = 's32[1]{0}', space=sflag, size = 0x4, scoped, tag = 'scoped memory for tpu_custom_call.1']
    %10 = vsyncpa [#allocation3], 0
    // Predicated region
    $region2: #{tpu_custom_call.1} parent=1 // pred_check
      _
    $region3: #{tpu_custom_call.1} parent=1 // pred_check_branch
      %12 = sbr.rel (0) target = $region5
    $region4: #{tpu_custom_call.1} parent=1 // pred_region
      _
    $region5: #{tpu_custom_call.1} parent=1 // pred_fallthru
      _
    // Predicated region
    $region6: #{tpu_custom_call.1} parent=1 // pred_check
      _
    $region7: #{tpu_custom_call.1} parent=1 // pred_check_branch
      %14 = sbr.rel (0) target = $region9
    $region8: #{tpu_custom_call.1} parent=1 // pred_region
      _
    $region9: #{tpu_custom_call.1} parent=1 // pred_fallthru
      _
    // Predicated region
    $region10: #{tpu_custom_call.1} parent=1 // pred_check
      _
    $region11: #{tpu_custom_call.1} parent=1 // pred_check_branch
      %16 = sbr.rel (0) target = $region13
    $region12: #{tpu_custom_call.1} parent=1 // pred_region
      _
    $region13: #{tpu_custom_call.1} parent=1 // pred_fallthru
      _
    // Predicated region
    $region14: #{tpu_custom_call.1} parent=1 // pred_check
      _
    $region15: #{tpu_custom_call.1} parent=1 // pred_check_branch
      %18 = sbr.rel (0) target = $region17
    $region16: #{tpu_custom_call.1} parent=1 // pred_region
      _
    $region17: #{tpu_custom_call.1} parent=1 // pred_fallthru
      _
    // Predicated region
    $region18: #{tpu_custom_call.1} parent=1 // pred_check
      _
    $region19: #{tpu_custom_call.1} parent=1 // pred_check_branch
      %20 = sbr.rel (0) target = $region21
    $region20: #{tpu_custom_call.1} parent=1 // pred_region
      _
    $region21: #{tpu_custom_call.1} parent=1 // pred_fallthru
      _
    %v21 = vld [vmem:[%s1] sm:$0xff]
    %v22 = vld [vmem:[%s1 + $0x8] sm:$0xff]
    %v23 = vld [vmem:[%s1 + $0x10] sm:$0xff]
    %v24 = vld [vmem:[%s1 + $0x18] sm:$0xff]
    %v25 = vld [vmem:[%s1 + $0x20] sm:$0xff]
    %v26 = vld [vmem:[%s1 + $0x28] sm:$0xff]
    %v27 = vld [vmem:[%s1 + $0x30] sm:$0xff]
    %v28 = vld [vmem:[%s1 + $0x38] sm:$0xff]
    %v29 = vld [vmem:[%s0] sm:$0xff]
    %v30 = vld [vmem:[%s0 + $0x8] sm:$0xff]
    %v31 = vld [vmem:[%s2] sm:$0xff]
    %v32 = vld [vmem:[%s2 + $0x8] sm:$0xff]
    %v33 = vld [vmem:[%s2 + $0x10] sm:$0xff]
    %v34 = vld [vmem:[%s2 + $0x18] sm:$0xff]
    %v35 = vld [vmem:[%s2 + $0x20] sm:$0xff]
    %v36 = vld [vmem:[%s2 + $0x28] sm:$0xff]
    %v37 = vld [vmem:[%s2 + $0x30] sm:$0xff]
    %v38 = vld [vmem:[%s2 + $0x38] sm:$0xff]
    %40 = vset.pattern.permute.xlu0 0
    %41 = vperm.xlu0 %40, %v31
    %v42 = vpop.permute.xlu0 %41
    %45 = vset.pattern.permute.xlu0 0
    %46 = vperm.xlu0 %45, %v32
    %v47 = vpop.permute.xlu0 %46
    %50 = vset.pattern.permute.xlu0 0
    %51 = vperm.xlu0 %50, %v33
    %v52 = vpop.permute.xlu0 %51
    %55 = vset.pattern.permute.xlu0 0
    %56 = vperm.xlu0 %55, %v34
    %v57 = vpop.permute.xlu0 %56
    %60 = vset.pattern.permute.xlu0 0
    %61 = vperm.xlu0 %60, %v35
    %v62 = vpop.permute.xlu0 %61
    %65 = vset.pattern.permute.xlu0 0
    %66 = vperm.xlu0 %65, %v36
    %v67 = vpop.permute.xlu0 %66
    %70 = vset.pattern.permute.xlu0 0
    %71 = vperm.xlu0 %70, %v37
    %v72 = vpop.permute.xlu0 %71
    %75 = vset.pattern.permute.xlu0 0
    %76 = vperm.xlu0 %75, %v38
    %v77 = vpop.permute.xlu0 %76
    %vm79 = vcmask 64512
    %v81 = vsel %vm79, %v21, 0
    %v84 = vsel %vm79, %v22, 0
    %v87 = vsel %vm79, %v23, 0
    %v90 = vsel %vm79, %v24, 0
    %v93 = vsel %vm79, %v25, 0
    %v96 = vsel %vm79, %v26, 0
    %v99 = vsel %vm79, %v27, 0
    %v102 = vsel %vm79, %v28, 0
    %104 = vmatprep.subr.mxu0 %v30
    %105 = vmatpush1.msra.mxu0 %v29
    %106 = vmatprep.subr.mxu0 0.0
    %107 = vmatpush1.msra.mxu0 0.0
    %108 = vmatprep.subr.mxu0 0.0
    %109 = vmatpush1.msra.mxu0 0.0
    %110 = vmatprep.subr.mxu0 0.0
    %111 = vmatpush1.msra.mxu0 0.0
    %112 = vmatprep.subr.mxu0 0.0
    %113 = vmatpush1.msra.mxu0 0.0
    %114 = vmatprep.subr.mxu0 0.0
    %115 = vmatpush1.msra.mxu0 0.0
    %116 = vmatprep.subr.mxu0 0.0
    %117 = vmatpush1.msra.mxu0 0.0
    %118 = vmatprep.subr.mxu0 0.0
    %119 = vmatpush1.msra.mxu0 0.0
    %120 = vmatprep.subr.mxu0 0.0
    %121 = vmatpush1.msra.mxu0 0.0
    %122 = vmatprep.subr.mxu0 0.0
    %123 = vmatpush1.msra.mxu0 0.0
    %124 = vmatprep.subr.mxu0 0.0
    %125 = vmatpush1.msra.mxu0 0.0
    %126 = vmatprep.subr.mxu0 0.0
    %127 = vmatpush1.msra.mxu0 0.0
    %128 = vmatprep.subr.mxu0 0.0
    %129 = vmatpush1.msra.mxu0 0.0
    %130 = vmatprep.subr.mxu0 0.0
    %131 = vmatpush1.msra.mxu0 0.0
    %132 = vmatprep.subr.mxu0 0.0
    %133 = vmatpush1.msra.mxu0 0.0
    %134 = vmatprep.subr.mxu0 0.0
    %135 = vmatpush1.msra.mxu0 0.0
    %136 = vmatprep.subr.mxu0 0.0
    %137 = vmatpush1.msra.mxu0 0.0
    %138 = vmatprep.subr.mxu0 0.0
    %139 = vmatpush1.msra.mxu0 0.0
    %140 = vmatprep.subr.mxu0 0.0
    %141 = vmatpush1.msra.mxu0 0.0
    %142 = vmatprep.subr.mxu0 0.0
    %143 = vmatpush1.msra.mxu0 0.0
    %144 = vmatprep.subr.mxu0 0.0
    %145 = vmatpush1.msra.mxu0 0.0
    %146 = vmatprep.subr.mxu0 0.0
    %147 = vmatpush1.msra.mxu0 0.0
    %148 = vmatprep.subr.mxu0 0.0
    %149 = vmatpush1.msra.mxu0 0.0
    %150 = vmatprep.subr.mxu0 0.0
    %151 = vmatpush1.msra.mxu0 0.0
    %152 = vmatprep.subr.mxu0 0.0
    %153 = vmatpush1.msra.mxu0 0.0
    %154 = vmatprep.subr.mxu0 0.0
    %155 = vmatpush1.msra.mxu0 0.0
    %156 = vmatprep.subr.mxu0 0.0
    %157 = vmatpush1.msra.mxu0 0.0
    %158 = vmatprep.subr.mxu0 0.0
    %159 = vmatpush1.msra.mxu0 0.0
    %160 = vmatprep.subr.mxu0 0.0
    %161 = vmatpush1.msra.mxu0 0.0
    %162 = vmatprep.subr.mxu0 0.0
    %163 = vmatpush1.msra.mxu0 0.0
    %164 = vmatprep.subr.mxu0 0.0
    %165 = vmatpush1.msra.mxu0 0.0
    %166 = vmatprep.subr.mxu0 0.0
    %167 = vmatpush1.msra.mxu0 0.0
    %168 = vmatprep.mubr.f32.mxu0 0.0
    %169 = vmatmul.mubr.f32.gmra.mrb[0].mxu0 %v81
    %v170 = vpop.f32.mrb[0].mxu0
    %v171 = vadd.f32 %v42, %v170
    %v172 = vpop.f32.mrb[0].mxu0
    %v173 = vadd.f32 %v42, %v172
    %174 = vmatprep.mubr.f32.mxu0 0.0
    %175 = vmatmul.mubr.f32.gmra.mrb[0].mxu0 %v84
    %v176 = vpop.f32.mrb[0].mxu0
    %v177 = vadd.f32 %v47, %v176
    %v178 = vpop.f32.mrb[0].mxu0
    %v179 = vadd.f32 %v47, %v178
    %180 = vmatprep.mubr.f32.mxu0 0.0
    %181 = vmatmul.mubr.f32.gmra.mrb[0].mxu0 %v87
    %v182 = vpop.f32.mrb[0].mxu0
    %v183 = vadd.f32 %v52, %v182
    %v184 = vpop.f32.mrb[0].mxu0
    %v185 = vadd.f32 %v52, %v184
    %186 = vmatprep.mubr.f32.mxu0 0.0
    %187 = vmatmul.mubr.f32.gmra.mrb[0].mxu0 %v90
    %v188 = vpop.f32.mrb[0].mxu0
    %v189 = vadd.f32 %v57, %v188
    %v190 = vpop.f32.mrb[0].mxu0
    %v191 = vadd.f32 %v57, %v190
    %192 = vmatprep.mubr.f32.mxu0 0.0
    %193 = vmatmul.mubr.f32.gmra.mrb[0].mxu0 %v93
    %v194 = vpop.f32.mrb[0].mxu0
    %v195 = vadd.f32 %v62, %v194
    %v196 = vpop.f32.mrb[0].mxu0
    %v197 = vadd.f32 %v62, %v196
    %198 = vmatprep.mubr.f32.mxu0 0.0
    %199 = vmatmul.mubr.f32.gmra.mrb[0].mxu0 %v96
    %v200 = vpop.f32.mrb[0].mxu0
    %v201 = vadd.f32 %v67, %v200
    %v202 = vpop.f32.mrb[0].mxu0
    %v203 = vadd.f32 %v67, %v202
    %204 = vmatprep.mubr.f32.mxu0 0.0
    %205 = vmatmul.mubr.f32.gmra.mrb[0].mxu0 %v99
    %v206 = vpop.f32.mrb[0].mxu0
    %v207 = vadd.f32 %v72, %v206
    %v208 = vpop.f32.mrb[0].mxu0
    %v209 = vadd.f32 %v72, %v208
    %210 = vmatprep.mubr.f32.mxu0 0.0
    %211 = vmatmul.mubr.f32.gmra.mrb[0].mxu0 %v102
    %v212 = vpop.f32.mrb[0].mxu0
    %v213 = vadd.f32 %v77, %v212
    %v214 = vpop.f32.mrb[0].mxu0
    %v215 = vadd.f32 %v77, %v214
    %216 = vdwg.mxu0
    %v217 = vmax.f32 %v171, 0.0
    %v218 = vmax.f32 %v173, 0.0
    %v219 = vmax.f32 %v177, 0.0
    %v220 = vmax.f32 %v179, 0.0
    %v221 = vmax.f32 %v183, 0.0
    %v222 = vmax.f32 %v185, 0.0
    %v223 = vmax.f32 %v189, 0.0
    %v224 = vmax.f32 %v191, 0.0
    %v225 = vmax.f32 %v195, 0.0
    %v226 = vmax.f32 %v197, 0.0
    %v227 = vmax.f32 %v201, 0.0
    %v228 = vmax.f32 %v203, 0.0
    %v229 = vmax.f32 %v207, 0.0
    %v230 = vmax.f32 %v209, 0.0
    %v231 = vmax.f32 %v213, 0.0
    %v232 = vmax.f32 %v215, 0.0
    %v233 = vld [vmem:[%s3] sm:$0xf]
    %v234 = vld [vmem:[%s4] sm:$0xf]
    %236 = vset.pattern.permute.xlu0 0
    %237 = vperm.xlu0 %236, %v234
    %v238 = vpop.permute.xlu0 %237
    %vm240 = vcmask 523264
    %v242 = vsel %vm240, %v233, 0
    %244 = vmatprep.subr.mxu0 %v218
    %245 = vmatpush1.msra.mxu0 %v217
    %246 = vmatprep.subr.mxu0 %v220
    %247 = vmatpush1.msra.mxu0 %v219
    %248 = vmatprep.subr.mxu0 %v222
    %249 = vmatpush1.msra.mxu0 %v221
    %250 = vmatprep.subr.mxu0 %v224
    %251 = vmatpush1.msra.mxu0 %v223
    %252 = vmatprep.subr.mxu0 %v226
    %253 = vmatpush1.msra.mxu0 %v225
    %254 = vmatprep.subr.mxu0 %v228
    %255 = vmatpush1.msra.mxu0 %v227
    %256 = vmatprep.subr.mxu0 %v230
    %257 = vmatpush1.msra.mxu0 %v229
    %258 = vmatprep.subr.mxu0 %v232
    %259 = vmatpush1.msra.mxu0 %v231
    %260 = vmatprep.subr.mxu0 0.0
    %261 = vmatpush1.msra.mxu0 0.0
    %262 = vmatprep.subr.mxu0 0.0
    %263 = vmatpush1.msra.mxu0 0.0
    %264 = vmatprep.subr.mxu0 0.0
    %265 = vmatpush1.msra.mxu0 0.0
    %266 = vmatprep.subr.mxu0 0.0
    %267 = vmatpush1.msra.mxu0 0.0
    %268 = vmatprep.subr.mxu0 0.0
    %269 = vmatpush1.msra.mxu0 0.0
    %270 = vmatprep.subr.mxu0 0.0
    %271 = vmatpush1.msra.mxu0 0.0
    %272 = vmatprep.subr.mxu0 0.0
    %273 = vmatpush1.msra.mxu0 0.0
    %274 = vmatprep.subr.mxu0 0.0
    %275 = vmatpush1.msra.mxu0 0.0
    %276 = vmatprep.subr.mxu0 0.0
    %277 = vmatpush1.msra.mxu0 0.0
    %278 = vmatprep.subr.mxu0 0.0
    %279 = vmatpush1.msra.mxu0 0.0
    %280 = vmatprep.subr.mxu0 0.0
    %281 = vmatpush1.msra.mxu0 0.0
    %282 = vmatprep.subr.mxu0 0.0
    %283 = vmatpush1.msra.mxu0 0.0
    %284 = vmatprep.subr.mxu0 0.0
    %285 = vmatpush1.msra.mxu0 0.0
    %286 = vmatprep.subr.mxu0 0.0
    %287 = vmatpush1.msra.mxu0 0.0
    %288 = vmatprep.subr.mxu0 0.0
    %289 = vmatpush1.msra.mxu0 0.0
    %290 = vmatprep.subr.mxu0 0.0
    %291 = vmatpush1.msra.mxu0 0.0
    %292 = vmatprep.subr.mxu0 0.0
    %293 = vmatpush1.msra.mxu0 0.0
    %294 = vmatprep.subr.mxu0 0.0
    %295 = vmatpush1.msra.mxu0 0.0
    %296 = vmatprep.subr.mxu0 0.0
    %297 = vmatpush1.msra.mxu0 0.0
    %298 = vmatprep.subr.mxu0 0.0
    %299 = vmatpush1.msra.mxu0 0.0
    %300 = vmatprep.subr.mxu0 0.0
    %301 = vmatpush1.msra.mxu0 0.0
    %302 = vmatprep.subr.mxu0 0.0
    %303 = vmatpush1.msra.mxu0 0.0
    %304 = vmatprep.subr.mxu0 0.0
    %305 = vmatpush1.msra.mxu0 0.0
    %306 = vmatprep.subr.mxu0 0.0
    %307 = vmatpush1.msra.mxu0 0.0
    %308 = vmatprep.mubr.f32.mxu0 0.0
    %309 = vmatmul.mubr.f32.gmra.mrb[0].mxu0 %v242
    %v310 = vpop.f32.mrb[0].mxu0
    %v311 = vadd.f32 %v238, %v310
    %v312 = vpop.f32.mrb[0].mxu0
    %v313 = vadd.f32 %v238, %v312
    %314 = vdwg.mxu0
    %vm315 = vcmask 1043456
    %v316 = vsel %vm315, %v311, -inf
    %v317 = vrot.slane %v316, 4
    %v318 = vmax.f32 %v316, %v317
    %v319 = vrot.slane %v318, 2
    %v320 = vmax.f32 %v318, %v319
    %v321 = vrot.slane %v320, 1
    %v322 = vmax.f32 %v320, %v321
    %v323 = vsel %vm315, %v313, -inf
    %v324 = vrot.slane %v323, 4
    %v325 = vmax.f32 %v323, %v324
    %v326 = vrot.slane %v325, 2
    %v327 = vmax.f32 %v325, %v326
    %v328 = vrot.slane %v327, 1
    %v329 = vmax.f32 %v327, %v328
    %v330 = vsub.f32 %v311, %v322
    %v331 = vsub.f32 %v313, %v329
    %v332 = vmul.f32 %v330, 1.442695
    %v333 = vpow.pop %v332
    %v334 = vmul.f32 %v331, 1.442695
    %v335 = vpow.pop %v334
    %v336 = vsel %vm315, %v333, 0.0
    %v337 = vrot.slane %v336, 4
    %v338 = vadd.f32 %v336, %v337
    %v339 = vrot.slane %v338, 2
    %v340 = vadd.f32 %v338, %v339
    %v341 = vrot.slane %v340, 1
    %v342 = vadd.f32 %v340, %v341
    %v343 = vsel %vm315, %v335, 0.0
    %v344 = vrot.slane %v343, 4
    %v345 = vadd.f32 %v343, %v344
    %v346 = vrot.slane %v345, 2
    %v347 = vadd.f32 %v345, %v346
    %v348 = vrot.slane %v347, 1
    %v349 = vadd.f32 %v347, %v348
    %v350 = vrcp.pop %v342
    %v351 = vmul.f32 %v333, %v350
    %v352 = vrcp.pop %v349
    %v353 = vmul.f32 %v335, %v352
    %v356 = vcombine.low %v351, %v353
    %358 = vst [vmem:[#allocation2] sm:$0xff] %v356
    // Predicated region
    $region22: #{tpu_custom_call.1} parent=1 // pred_check
      _
    $region23: #{tpu_custom_call.1} parent=1 // pred_check_branch
      %360 = sbr.rel (0) target = $region25
    $region24: #{tpu_custom_call.1} parent=1 // pred_region
      %s362 = ssub.s32 128, 128
      %363 = vsyncadd [#allocation3], %s362
      %s365 = sshll.u32 [#allocation2], 4
      %s366 = int_to_ptr.vmem [resolvable:$true] %s365
      %368 = dma.vmem_to_hbm [thread:$0]  %s366, 128, %s5, [#allocation3]
    $region25: #{tpu_custom_call.1} parent=1 // pred_fallthru
      _
    // Predicated region
    $region26: #{tpu_custom_call.1} parent=1 // pred_check
      _
    $region27: #{tpu_custom_call.1} parent=1 // pred_check_branch
      %370 = sbr.rel (0) target = $region29
    $region28: #{tpu_custom_call.1} parent=1 // pred_region
      %371 = dma.done [#allocation3], 128
    $region29: #{tpu_custom_call.1} parent=1 // pred_fallthru
      _
    %372 = vsyncpa [#allocation3], 1

</llo_original>
